<compile_context>
chip_gen: v6e
topology: v6e:2x2x1
jax: 0.10.0
libtpu: 0.0.40
codegen_flags: <defaults>
</compile_context>

<pallas_src>
import functools
import math

import jax
import jax.numpy as jnp
from jax import lax
from jax.experimental import pallas as pl
from jax.experimental.pallas import tpu as pltpu


# --------------------------------------------------------------------------
# Fused kernel: DMA row-gather + positional add + LayerNorm
# --------------------------------------------------------------------------
def _embed_ln_kernel(ids_ref, pe_ref, gamma_ref, beta_ref, tok_hbm,
                     o_ref, rows, sem, *, eps, tl, L):
    """One (batch, length-tile) grid step.

    ids_ref  : [B*L]   int32 token ids in SMEM (scalar prefetch)
    pe_ref   : [L, E]  sinusoidal positional table, VMEM-resident (constant idx)
    gamma_ref: [1, E]  LayerNorm weight (VMEM-resident)
    beta_ref : [1, E]  LayerNorm bias   (VMEM-resident)
    tok_hbm  : [V, E]  token embedding table, left in HBM (memory_space=ANY)
    o_ref    : [tl, E] output tile (leading batch dim squeezed)
    rows     : [tl, E] f32 VMEM scratch for the gathered embedding rows
    sem      : single DMA semaphore shared by the row-gather copies
    """
    b = pl.program_id(0)
    j = pl.program_id(1)
    base = b * L + j * tl

    # ---- DMA row gather: only the tl rows needed by this tile leave HBM ----
    @pl.loop(0, tl)
    def _start(i):
        idx = ids_ref[base + i]
        pltpu.make_async_copy(tok_hbm.at[pl.ds(idx, 1), :],
                              rows.at[pl.ds(i, 1), :], sem).start()

    @pl.loop(0, tl)
    def _wait(i):
        idx = ids_ref[base + i]
        pltpu.make_async_copy(tok_hbm.at[pl.ds(idx, 1), :],
                              rows.at[pl.ds(i, 1), :], sem).wait()

    # ---- positional add: pe is resident, slice in-kernel (never re-DMA'd) --
    pos = pl.multiple_of(j * tl, tl)
    x = rows[...] + pe_ref[pl.ds(pos, tl), :]                     # [tl, E] f32

    # ---- LayerNorm over E, single-pass stats, eps = 1e-12 ------------------
    inv_e = 1.0 / x.shape[-1]
    s1 = jnp.sum(x, axis=-1, keepdims=True)
    s2 = jnp.sum(x * x, axis=-1, keepdims=True)
    mean = s1 * inv_e
    var = jnp.maximum(s2 * inv_e - mean * mean, 0.0)
    y = (x - mean) * lax.rsqrt(var + eps) * gamma_ref[...] + beta_ref[...]

    # Dropout(p=0.1): inference mode -> identity.
    o_ref[...] = y.astype(o_ref.dtype)


def _pick_length_tile(L, max_tile=256):
    """Largest length tile <= max_tile dividing L (multiple of 8 when tiled)."""
    if L <= max_tile:
        return L
    for t in range(max_tile, 7, -8):
        if L % t == 0:
            return t
    return L  # fallback: single full-length block


# --------------------------------------------------------------------------
# Parameter construction (matches nn.Embedding / PositionalEmbedding)
# --------------------------------------------------------------------------
def init_params(key, vocab_size, embed_size, max_len=512):
    tok = jax.random.normal(key, (vocab_size, embed_size), jnp.float32)
    tok = tok.at[0].set(0.0)                       # padding_idx = 0 -> zero row

    position = jnp.arange(max_len, dtype=jnp.float32)[:, None]          # [max_len, 1]
    div_term = jnp.exp(jnp.arange(0, embed_size, 2, dtype=jnp.float32)
                       * (-math.log(10000.0) / embed_size))             # [E/2]
    ang = position * div_term                                           # [max_len, E/2]
    # Interleave -> pe[:, 0::2] = sin, pe[:, 1::2] = cos (even embed_size).
    pe = jnp.stack([jnp.sin(ang), jnp.cos(ang)], axis=-1).reshape(max_len, embed_size)

    gamma = jnp.ones((1, embed_size), jnp.float32)
    beta = jnp.zeros((1, embed_size), jnp.float32)
    return dict(token=tok, pe=pe, gamma=gamma, beta=beta)


# --------------------------------------------------------------------------
# Forward pass
# --------------------------------------------------------------------------
def bert_embedding(sequence, params, psi=None, out_dtype=jnp.float32):
    B, L = sequence.shape
    V, E = params["token"].shape
    pe = params["pe"][:L]                                 # [L, E]
    ids = sequence.astype(jnp.int32).reshape(B * L)       # flat ids -> SMEM prefetch

    tl = _pick_length_tile(L)
    kern = functools.partial(_embed_ln_kernel, eps=1e-12, tl=tl, L=L)

    emb = pl.pallas_call(
        kern,
        out_shape=jax.ShapeDtypeStruct((B, L, E), out_dtype),
        grid_spec=pltpu.PrefetchScalarGridSpec(
            num_scalar_prefetch=1,
            grid=(B, L // tl),
            in_specs=[
                pl.BlockSpec((L, E), lambda b, j, ids: (0, 0)),   # pe (resident)
                pl.BlockSpec((1, E), lambda b, j, ids: (0, 0)),   # gamma (resident)
                pl.BlockSpec((1, E), lambda b, j, ids: (0, 0)),   # beta  (resident)
                pl.BlockSpec(memory_space=pl.ANY),                # token table (HBM)
            ],
            out_specs=pl.BlockSpec((pl.Squeezed(), tl, E),
                                   lambda b, j, ids: (b, j, 0)),
            scratch_shapes=[
                pltpu.VMEM((tl, E), jnp.float32),                 # gathered rows
                pltpu.SemaphoreType.DMA,                          # gather semaphore
            ],
        ),
        compiler_params=pltpu.CompilerParams(
            dimension_semantics=("parallel", "parallel")),
    )(ids, pe, params["gamma"], params["beta"], params["token"])

    # Dropout: inference mode (identity).  Learned-positional branch not used.
    return emb, None


if __name__ == "__main__":
    vocab_size, embed_size = 32, 128
    B, L, max_len = 2, 16, 512

    key = jax.random.PRNGKey(0)
    kp, ks = jax.random.split(key)
    params = init_params(kp, vocab_size, embed_size, max_len=max_len)
    sequence = jax.random.randint(ks, (B, L), 0, vocab_size, dtype=jnp.int32)

    embeddings, aux = bert_embedding(sequence, params)
    jax.block_until_ready(embeddings)

    # Pure-JAX reference (exact token gather + pos add + LayerNorm).
    x = params["token"][sequence] + params["pe"][:L][None]
    mean = x.mean(-1, keepdims=True)
    xc = x - mean
    var = (xc * xc).mean(-1, keepdims=True)
    ref = xc * jax.lax.rsqrt(var + 1e-12) * params["gamma"] + params["beta"]

    assert embeddings.shape == (B, L, embed_size)
    assert aux is None
    assert jnp.allclose(embeddings, ref, atol=1e-3, rtol=1e-3)
    print("KERNEL_OK")
</pallas_src>

<mosaic_0001>
module attributes {stable_mosaic.version = 11 : i64} {
  func.func @_embed_ln_kernel(%arg0: i32, %arg1: i32, %arg2: memref<32xi32, #tpu.memory_space<smem>>, %arg3: memref<16x128xf32, #tpu.memory_space<vmem>>, %arg4: memref<1x128xf32, #tpu.memory_space<vmem>>, %arg5: memref<1x128xf32, #tpu.memory_space<vmem>>, %arg6: memref<32x128xf32, #tpu.memory_space<any>>, %arg7: memref<1x16x128xf32, #tpu.memory_space<vmem>>, %arg8: memref<16x128xf32, #tpu.memory_space<vmem>>, %arg9: memref<!tpu.dma_semaphore, #tpu.memory_space<semaphore_mem>>) attributes {dimension_semantics = [#tpu.dimension_semantics<parallel>, #tpu.dimension_semantics<parallel>], iteration_bounds = array<i64: 2, 1>, scalar_prefetch = 1 : i64, scratch_operands = 2 : i64, tpu.core_type = #tpu.core_type<tc>, window_params = [{pipeline_mode = #tpu.pipeline_mode<synchronous>, transform_indices = @transform_0, window_bounds = array<i64: 16, 128>}, {pipeline_mode = #tpu.pipeline_mode<synchronous>, transform_indices = @transform_1, window_bounds = array<i64: 1, 128>}, {pipeline_mode = #tpu.pipeline_mode<synchronous>, transform_indices = @transform_2, window_bounds = array<i64: 1, 128>}, {}, {transform_indices = @transform_4, window_bounds = array<i64: 1, 16, 128>}]} {
    %c16_i32 = arith.constant 16 : i32
    %0 = arith.muli %arg0, %c16_i32 : i32
    %c16_i32_0 = arith.constant 16 : i32
    %1 = arith.muli %arg1, %c16_i32_0 : i32
    %2 = arith.addi %0, %1 : i32
    %c0_i32 = arith.constant 0 : i32
    %c16_i32_1 = arith.constant 16 : i32
    %3 = arith.addi %c0_i32, %c16_i32_1 : i32
    %c1_i32 = arith.constant 1 : i32
    scf.for %arg10 = %c0_i32 to %3 step %c1_i32  : i32 {
      %c1_i32_22 = arith.constant 1 : i32
      %40 = arith.muli %arg10, %c1_i32_22 : i32
      %c0_i32_23 = arith.constant 0 : i32
      %41 = arith.addi %c0_i32_23, %40 : i32
      %42 = arith.addi %2, %41 : i32
      %43 = arith.index_cast %42 : i32 to index
      %44 = memref.load %arg2[%43] : memref<32xi32, #tpu.memory_space<smem>>
      %c0_i32_24 = arith.constant 0 : i32
      %45 = tpu.memref_slice %arg6[%44, %c0_i32_24] : memref<32x128xf32, #tpu.memory_space<any>> -> memref<1x128xf32, #tpu.memory_space<any>>
      %c0_i32_25 = arith.constant 0 : i32
      %46 = tpu.memref_slice %arg8[%41, %c0_i32_25] : memref<16x128xf32, #tpu.memory_space<vmem>> -> memref<1x128xf32, #tpu.memory_space<vmem>>
      tpu.enqueue_dma source(%45 : memref<1x128xf32, #tpu.memory_space<any>>) target(%46 : memref<1x128xf32, #tpu.memory_space<vmem>>) target_semaphore(%arg9 : memref<!tpu.dma_semaphore, #tpu.memory_space<semaphore_mem>>)
    }
    %c16_i32_2 = arith.constant 16 : i32
    %c0_i32_3 = arith.constant 0 : i32
    %c16_i32_4 = arith.constant 16 : i32
    %4 = arith.addi %c0_i32_3, %c16_i32_4 : i32
    %c1_i32_5 = arith.constant 1 : i32
    scf.for %arg10 = %c0_i32_3 to %4 step %c1_i32_5  : i32 {
      %c1_i32_22 = arith.constant 1 : i32
      %40 = arith.muli %arg10, %c1_i32_22 : i32
      %c0_i32_23 = arith.constant 0 : i32
      %41 = arith.addi %c0_i32_23, %40 : i32
      %42 = arith.addi %2, %41 : i32
      %43 = arith.index_cast %42 : i32 to index
      %44 = memref.load %arg2[%43] : memref<32xi32, #tpu.memory_space<smem>>
      %c0_i32_24 = arith.constant 0 : i32
      %45 = tpu.memref_slice %arg6[%44, %c0_i32_24] : memref<32x128xf32, #tpu.memory_space<any>> -> memref<1x128xf32, #tpu.memory_space<any>>
      %c0_i32_25 = arith.constant 0 : i32
      %46 = tpu.memref_slice %arg8[%41, %c0_i32_25] : memref<16x128xf32, #tpu.memory_space<vmem>> -> memref<1x128xf32, #tpu.memory_space<vmem>>
      tpu.wait_dma2 semaphore(%arg9 : memref<!tpu.dma_semaphore, #tpu.memory_space<semaphore_mem>>) src(%45 : memref<1x128xf32, #tpu.memory_space<any>>) dst(%46 : memref<1x128xf32, #tpu.memory_space<vmem>>)
    }
    %c16_i32_6 = arith.constant 16 : i32
    %c16_i32_7 = arith.constant 16 : i32
    %5 = arith.muli %arg1, %c16_i32_7 : i32
    %6 = tpu.assume_multiple %5, 16 : i32
    %c0 = arith.constant 0 : index
    %c0_8 = arith.constant 0 : index
    %7 = vector.load %arg8[%c0, %c0_8] : memref<16x128xf32, #tpu.memory_space<vmem>>, vector<16x128xf32>
    %8 = arith.index_cast %6 : i32 to index
    %c0_9 = arith.constant 0 : index
    %9 = vector.load %arg3[%8, %c0_9] : memref<16x128xf32, #tpu.memory_space<vmem>>, vector<16x128xf32>
    %10 = arith.addf %7, %9 : vector<16x128xf32>
    %cst = arith.constant dense<0.000000e+00> : vector<16xf32>
    %11 = vector.multi_reduction <add>, %10, %cst [1] : vector<16x128xf32> to vector<16xf32>
    %12 = vector.shape_cast %11 : vector<16xf32> to vector<16x1xf32>
    %13 = arith.mulf %10, %10 : vector<16x128xf32>
    %cst_10 = arith.constant dense<0.000000e+00> : vector<16xf32>
    %14 = vector.multi_reduction <add>, %13, %cst_10 [1] : vector<16x128xf32> to vector<16xf32>
    %15 = vector.shape_cast %14 : vector<16xf32> to vector<16x1xf32>
    %cst_11 = arith.constant 7.812500e-03 : f32
    %16 = vector.broadcast %cst_11 : f32 to vector<16x1xf32>
    %17 = arith.mulf %12, %16 : vector<16x1xf32>
    %cst_12 = arith.constant 7.812500e-03 : f32
    %18 = vector.broadcast %cst_12 : f32 to vector<16x1xf32>
    %19 = arith.mulf %15, %18 : vector<16x1xf32>
    %20 = arith.mulf %17, %17 : vector<16x1xf32>
    %21 = arith.subf %19, %20 : vector<16x1xf32>
    %cst_13 = arith.constant 0.000000e+00 : f32
    %22 = vector.broadcast %cst_13 : f32 to vector<16x1xf32>
    %23 = arith.maximumf %21, %22 : vector<16x1xf32>
    %24 = vector.broadcast %17 : vector<16x1xf32> to vector<16x128xf32>
    %25 = arith.subf %10, %24 : vector<16x128xf32>
    %cst_14 = arith.constant 9.99999996E-13 : f32
    %26 = vector.broadcast %cst_14 : f32 to vector<16x1xf32>
    %27 = arith.addf %23, %26 : vector<16x1xf32>
    %28 = math.rsqrt %27 : vector<16x1xf32>
    %29 = vector.broadcast %28 : vector<16x1xf32> to vector<16x128xf32>
    %30 = arith.mulf %25, %29 : vector<16x128xf32>
    %c0_15 = arith.constant 0 : index
    %c0_16 = arith.constant 0 : index
    %31 = vector.load %arg4[%c0_15, %c0_16] : memref<1x128xf32, #tpu.memory_space<vmem>>, vector<1x128xf32>
    %32 = vector.broadcast %31 : vector<1x128xf32> to vector<16x128xf32>
    %33 = arith.mulf %30, %32 : vector<16x128xf32>
    %c0_17 = arith.constant 0 : index
    %c0_18 = arith.constant 0 : index
    %34 = vector.load %arg5[%c0_17, %c0_18] : memref<1x128xf32, #tpu.memory_space<vmem>>, vector<1x128xf32>
    %35 = vector.broadcast %34 : vector<1x128xf32> to vector<16x128xf32>
    %36 = arith.addf %33, %35 : vector<16x128xf32>
    %c0_19 = arith.constant 0 : index
    %c0_20 = arith.constant 0 : index
    %c0_21 = arith.constant 0 : index
    %37 = vector.load %arg7[%c0_19, %c0_20, %c0_21] : memref<1x16x128xf32, #tpu.memory_space<vmem>>, vector<1x16x128xf32>
    %38 = vector.shape_cast %37 : vector<1x16x128xf32> to vector<16x128xf32>
    %39 = vector.shape_cast %36 : vector<16x128xf32> to vector<1x16x128xf32>
    tpu.vector_store %arg7[%c0_19, %c0_20, %c0_21], %39 {strides = array<i32>} : memref<1x16x128xf32, #tpu.memory_space<vmem>>, vector<1x16x128xf32>,
    return
  }
  func.func @transform_0(%arg0: i32, %arg1: i32, %arg2: memref<32xi32, #tpu.memory_space<smem>>) -> (i32, i32) {
    %c0_i32 = arith.constant 0 : i32
    %c0_i32_0 = arith.constant 0 : i32
    %c0_i32_1 = arith.constant 0 : i32
    return %c0_i32, %c0_i32_0 : i32, i32
  }
  func.func @transform_1(%arg0: i32, %arg1: i32, %arg2: memref<32xi32, #tpu.memory_space<smem>>) -> (i32, i32) {
    %c0_i32 = arith.constant 0 : i32
    %c0_i32_0 = arith.constant 0 : i32
    %c0_i32_1 = arith.constant 0 : i32
    return %c0_i32, %c0_i32_0 : i32, i32
  }
  func.func @transform_2(%arg0: i32, %arg1: i32, %arg2: memref<32xi32, #tpu.memory_space<smem>>) -> (i32, i32) {
    %c0_i32 = arith.constant 0 : i32
    %c0_i32_0 = arith.constant 0 : i32
    %c0_i32_1 = arith.constant 0 : i32
    return %c0_i32, %c0_i32_0 : i32, i32
  }
  func.func @transform_4(%arg0: i32, %arg1: i32, %arg2: memref<32xi32, #tpu.memory_space<smem>>) -> (i32, i32, i32) {
    %c0_i32 = arith.constant 0 : i32
    %c0_i32_0 = arith.constant 0 : i32
    return %arg0, %arg1, %c0_i32 : i32, i32, i32
  }
}

</mosaic_0001>

<llo_original>
// kernel: tpu_custom_call.1
$region0: #{tpu_custom_call.1}
  #allocation0 [shape = 'u32[]', space=smem, size = 0x4, offset = 0x4, fixed_abs, tag = 'smem constant byte address 0x4 - core index']
  #allocation1 [shape = 'u32[144,128]{1,0:T(1,128)}', space=vmem, size = 0x12000, scoped, tag = 'internal scratch']
  #allocation2 [shape = 'f32[16,128]{1,0:T(8,128)}', space=vmem, size = 0x2000, scoped, tag = 'scratch operand']
  #allocation3 [shape = 's32[1]{0}', space=sflag, size = 0x4, scoped, tag = 'scratch operand']
  #allocation4 [shape = 's32[1]{0}', space=sflag, size = 0x4, scoped, tag = 'scoped memory for tpu_custom_call.1']
  #allocation5 [shape = 'u8[512]{0}', space=smem, size = 0x200, scoped, tag = 'prefetched SMEM operand 0']
  #allocation10 [shape = 's32[]', space=sflag, size = 0x4, offset = 0, fixed_abs, tag = 'sflag constant byte address 0x0 - dummy sync flag']
  #allocation11 [shape = 's32[]', space=sflag, size = 0x4, offset = 0, fixed_abs, tag = 'sflag constant byte address 0x0 - dummy sync flag']
  #allocation12 [shape = 'u32[]', space=smem, size = 0x4, offset = 0x44, fixed_abs, tag = 'smem constant byte address 0x44 - assertion arg 0']
  #allocation13 [shape = 'u32[]', space=smem, size = 0x4, offset = 0x48, fixed_abs, tag = 'smem constant byte address 0x48 - assertion arg 1']
  %s0 = inlined_call_operand.hbm [shape: s32[32], index: 0, kind: input, shape index: {}]
  %s1 = inlined_call_operand.hbm [shape: f32[16,128], index: 1, kind: input, shape index: {}]
  %s2 = inlined_call_operand.vmem [shape: f32[1,128], index: 2, kind: input, shape index: {}]
  %s3 = inlined_call_operand.vmem [shape: f32[1,128], index: 3, kind: input, shape index: {}]
  %s4 = inlined_call_operand.hbm [shape: f32[32,128], index: 4, kind: input, shape index: {}]
  %s5 = inlined_call_operand.hbm [shape: f32[2,16,128], index: 5, kind: output, shape index: {}]
  %s6 = sld [smem:[#allocation0]]
  $region67: #{tpu_custom_call.1} parent=0
    _
  %s8 = ssub.s32 1, %s6
  %s9 = scalar_select 0, %s8, %s6
  %11 = dma.hbm_to_smem %s0, 16, [#allocation5], [#allocation4]
  %12 = dma.done [#allocation4], 16
  %13 = sfence
  $region1: #{tpu_custom_call.1} parent=0
    #allocation6 [shape = 'u8[8192]{0}', space=vmem, size = 0x2000, scoped, tag = 'input window, operand 1, single buffered']
    #allocation7 [shape = 's32[2]{0}', space=sflag, size = 0x8, scoped, tag = 'scoped memory for tpu_custom_call.1']
    #allocation8 [shape = 's32[2]{0}', space=sflag, size = 0x8, scoped, tag = 'scoped memory for tpu_custom_call.1']
    #allocation9 [shape = 'u8[16384]{0}', space=vmem, size = 0x4000, scoped, tag = 'output window, operand 0']
    %14 = vsyncpa [#allocation7], 0
    %15 = vsyncpa [#allocation8], 0
    %s16 = scalar_lea.sflag [#allocation8], 1
    %17 = vsyncpa %s16, 0
    loop: start=0, step=1, limit=4
    $region2: #{tpu_custom_call.1} parent=1 // loop_pre_header
      _
    $region3: #{tpu_custom_call.1} parent=1 // loop_header
      %s19 = sphi 0, %s23
      %p20 = scmp.ge.s32.totalorder %s19, 4
      %s26 = sphi 0, %s38
      %s27 = sphi 0, %s34
      %s28 = sphi 0, %s26
      %s29 = sphi 0, %s27
      %s30 = sphi 0, %s28
      %s31 = sphi 0, %s29
      %s39 = sphi 0, %s39
      %s41 = sphi 0, %s39
      %s42 = sphi 0, %s41
      %s56 = sphi 0, %s42
      %s60 = sphi 0, %s60
      %s62 = sphi 0, %s60
      %s63 = sphi 0, %s62
      %s77 = sphi 0, %s63
      %s81 = sphi 0, %s81
      %s83 = sphi 0, %s81
      %s84 = sphi 0, %s83
      %s98 = sphi 0, %s84
      %s106 = sphi 0, %s108
      %s109 = sphi 0, %s106
      %s110 = sphi 0, %s109
      %s126 = sphi 0, %s110
    $region4: #{tpu_custom_call.1} parent=1 // loop_header_branch
      %22 = sbr.rel (%p20) target = $region8
    $region5: #{tpu_custom_call.1} parent=1 // loop_body
      %s24 = ssub.s32 %s19, 1
      %s25 = ssub.s32 %s19, 2
      %s32 = sadd.s32 1, %s27
      %p33 = scmp.ge.s32.totalorder %s32, 1
      %s34 = scalar_select %p33, 0, %s32
      %s35 = sadd.s32 1, %s26
      %s36 = scalar_select %p33, %s35, %s26
      %p37 = scmp.ge.s32.totalorder %s36, 2
      %s38 = scalar_select %p37, 0, %s36
      %s40 = sadd.s32 %s39, 1
      %p43 = scmp.eq.s32.totalorder %s19, 1
      %p44 = scmp.ne.s32.totalorder %s39, %s41
      %p45 = scmp.eq.s32.totalorder %s19, 0
      %p46 = por %p44, %p45
      %p47 = scmp.ne.s32.totalorder %s39, %s41
      %p48 = scmp.eq.s32.totalorder %s24, 1
      %p49 = por %p47, %p48
      %p50 = scmp.ne.s32.totalorder %s41, %s42
      %p51 = scmp.eq.s32.totalorder %s24, 0
      %p52 = por %p50, %p51
      %p53 = scmp.ne.s32.totalorder %s41, %s42
      %p54 = scmp.eq.s32.totalorder %s25, 1
      %p55 = por %p53, %p54
      %p57 = scmp.ne.s32.totalorder %s42, %s56
      %p58 = scmp.eq.s32.totalorder %s25, 0
      %p59 = por %p57, %p58
      %s61 = sadd.s32 %s60, 1
      %p64 = scmp.eq.s32.totalorder %s19, 1
      %p65 = scmp.ne.s32.totalorder %s60, %s62
      %p66 = scmp.eq.s32.totalorder %s19, 0
      %p67 = por %p65, %p66
      %p68 = scmp.ne.s32.totalorder %s60, %s62
      %p69 = scmp.eq.s32.totalorder %s24, 1
      %p70 = por %p68, %p69
      %p71 = scmp.ne.s32.totalorder %s62, %s63
      %p72 = scmp.eq.s32.totalorder %s24, 0
      %p73 = por %p71, %p72
      %p74 = scmp.ne.s32.totalorder %s62, %s63
      %p75 = scmp.eq.s32.totalorder %s25, 1
      %p76 = por %p74, %p75
      %p78 = scmp.ne.s32.totalorder %s63, %s77
      %p79 = scmp.eq.s32.totalorder %s25, 0
      %p80 = por %p78, %p79
      %s82 = sadd.s32 %s81, 1
      %p85 = scmp.eq.s32.totalorder %s19, 1
      %p86 = scmp.ne.s32.totalorder %s81, %s83
      %p87 = scmp.eq.s32.totalorder %s19, 0
      %p88 = por %p86, %p87
      %p89 = scmp.ne.s32.totalorder %s81, %s83
      %p90 = scmp.eq.s32.totalorder %s24, 1
      %p91 = por %p89, %p90
      %p92 = scmp.ne.s32.totalorder %s83, %s84
      %p93 = scmp.eq.s32.totalorder %s24, 0
      %p94 = por %p92, %p93
      %p95 = scmp.ne.s32.totalorder %s83, %s84
      %p96 = scmp.eq.s32.totalorder %s25, 1
      %p97 = por %p95, %p96
      %p99 = scmp.ne.s32.totalorder %s84, %s98
      %p100 = scmp.eq.s32.totalorder %s25, 0
      %p101 = por %p99, %p100
      %s102 = ssub.s32 %s26, %s38
      %s103 = ssub.s32 %s27, %s34
      %s104 = sor.u32 %s102, %s103
      %p105 = scmp.eq.s32.totalorder %s104, 0
      %s107 = sadd.s32 %s106, 1
      %s108 = scalar_select %p105, %s106, %s107
      %p111 = pneg %p105
      %p112 = scmp.eq.s32.totalorder %s19, 1
      %p113 = por %p111, %p112
      %p114 = scmp.ne.s32.totalorder %s106, %s109
      %p115 = scmp.eq.s32.totalorder %s19, 0
      %p116 = por %p114, %p115
      %p117 = scmp.ne.s32.totalorder %s106, %s109
      %p118 = scmp.eq.s32.totalorder %s24, 1
      %p119 = por %p117, %p118
      %p120 = scmp.ne.s32.totalorder %s109, %s110
      %p121 = scmp.eq.s32.totalorder %s24, 0
      %p122 = por %p120, %p121
      %p123 = scmp.ne.s32.totalorder %s109, %s110
      %p124 = scmp.eq.s32.totalorder %s25, 1
      %p125 = por %p123, %p124
      %p127 = scmp.ne.s32.totalorder %s110, %s126
      %p128 = scmp.eq.s32.totalorder %s25, 0
      %p129 = por %p127, %p128
      %p130 = scmp.le.s32.totalorder 1, %s19
      %p131 = scmp.lt.s32.totalorder %s19, 3
      %p132 = pnand %p130, %p131
      %p133 = pneg %p132
      // Predicated region
      $region9: #{tpu_custom_call.1} parent=5 // pred_check
        _
      $region10: #{tpu_custom_call.1} parent=5 // pred_check_branch
        %135 = sbr.rel (%p132) target = $region12
      $region11: #{tpu_custom_call.1} parent=5 // pred_region
        %s136 = ssub.s32 %s19, 1
        // Predicated region
        $region13: #{tpu_custom_call.1} parent=11 // pred_check
          %p137 = pneg %p52
        $region14: #{tpu_custom_call.1} parent=11 // pred_check_branch
          %139 = sbr.rel (%p137) target = $region16
        $region15: #{tpu_custom_call.1} parent=11 // pred_region
          %s141 = ssub.s32 256, 256
          %142 = vsyncadd [#allocation7], %s141
          %s143 = sshll.u32 [#allocation6], 4
          %s144 = int_to_ptr.vmem [resolvable:$true] %s143
          %149 = dma.hbm_to_vmem [thread:$0]  %s1, 256, %s144, [#allocation7], 128, 128, 8
        $region16: #{tpu_custom_call.1} parent=11 // pred_fallthru
          _
        // Predicated region
        $region17: #{tpu_custom_call.1} parent=11 // pred_check
          %p150 = pneg %p73
        $region18: #{tpu_custom_call.1} parent=11 // pred_check_branch
          %152 = sbr.rel (%p150) target = $region20
        $region19: #{tpu_custom_call.1} parent=11 // pred_region
          _
        $region20: #{tpu_custom_call.1} parent=11 // pred_fallthru
          _
        // Predicated region
        $region21: #{tpu_custom_call.1} parent=11 // pred_check
          %p153 = pneg %p94
        $region22: #{tpu_custom_call.1} parent=11 // pred_check_branch
          %155 = sbr.rel (%p153) target = $region24
        $region23: #{tpu_custom_call.1} parent=11 // pred_region
          _
        $region24: #{tpu_custom_call.1} parent=11 // pred_fallthru
          _
      $region12: #{tpu_custom_call.1} parent=5 // pred_fallthru
        _
      %p156 = scmp.lt.s32.totalorder %s19, 2
      // Predicated region
      $region25: #{tpu_custom_call.1} parent=5 // pred_check
        %p157 = pneg %p156
      $region26: #{tpu_custom_call.1} parent=5 // pred_check_branch
        %159 = sbr.rel (%p157) target = $region28
      $region27: #{tpu_custom_call.1} parent=5 // pred_region
        _
      $region28: #{tpu_custom_call.1} parent=5 // pred_fallthru
        _
      %p160 = scmp.le.s32.totalorder 1, %s19
      %p161 = scmp.lt.s32.totalorder %s19, 3
      %p162 = pnand %p160, %p161
      %p163 = pneg %p162
      // Predicated region
      $region29: #{tpu_custom_call.1} parent=5 // pred_check
        _
      $region30: #{tpu_custom_call.1} parent=5 // pred_check_branch
        %165 = sbr.rel (%p162) target = $region32
      $region31: #{tpu_custom_call.1} parent=5 // pred_region
        %s166 = ssub.s32 %s19, 1
        // Predicated region
        $region33: #{tpu_custom_call.1} parent=31 // pred_check
          %p167 = pneg %p52
        $region34: #{tpu_custom_call.1} parent=31 // pred_check_branch
          %169 = sbr.rel (%p167) target = $region36
        $region35: #{tpu_custom_call.1} parent=31 // pred_region
          %170 = dma.done [#allocation7], 256
        $region36: #{tpu_custom_call.1} parent=31 // pred_fallthru
          _
        %p171 = pneg %p52
        %p172 = pneg %p49
        %p173 = pneg %p73
        %p174 = pneg %p70
        %p175 = pneg %p94
        %p176 = pneg %p91
        %p177 = pneg %p122
        %p178 = pneg %p119
        %s179 = sand.u32 %s109, 1
        %s180 = scalar_lea.sflag [#allocation8], %s179
        %s181 = sand.u32 %s109, 1
        %s182 = smul.addr %s181, 16
        %s183 = scalar_lea.vmem [#allocation9], %s182
        %s184 = smul.u32 2, %s29
        %s185 = smul.u32 %s28, 16
        %s186 = smul.u32 %s29, 16
        %s187 = sadd.s32 %s185, %s186
        loop: start=0, step=1, limit=16
        $region37: #{tpu_custom_call.1} parent=31 // loop_pre_header
          _
        $region38: #{tpu_custom_call.1} parent=31 // loop_header
          %s189 = sphi 0, %s193
          %p190 = scmp.ge.s32.totalorder %s189, 16
        $region39: #{tpu_custom_call.1} parent=31 // loop_header_branch
          %192 = sbr.rel (%p190) target = $region43
        $region40: #{tpu_custom_call.1} parent=31 // loop_body
          %s194 = sadd.s32 %s187, %s189
          %s195 = sld [smem:[#allocation5 + %s194]]
          %s196 = smul.addr %s195, 16
          %s197 = scalar_lea.hbm %s4, %s196
          %s198 = scalar_lea.vmem [#allocation2], %s189
          // Predicated region
          $region44: #{tpu_custom_call.1} parent=40 // pred_check
            _
          $region45: #{tpu_custom_call.1} parent=40 // pred_check_branch
            %200 = sbr.rel target = $region47
          $region46: #{tpu_custom_call.1} parent=40 // pred_region
            %201 = sst [smem:[#allocation12]] [#allocation11]
            %202 = sst [smem:[#allocation13]] [#allocation10]
          $region47: #{tpu_custom_call.1} parent=40 // pred_fallthru
            _
          %204 = shalt.err (0)
          %s206 = sshll.u32 %s198, 4
          %s207 = int_to_ptr.vmem [resolvable:$true] %s206
          %209 = dma.hbm_to_vmem [thread:$0]  %s197, 16, %s207, [#allocation3]
        $region41: #{tpu_custom_call.1} parent=31 // loop_footer
          %s193 = sadd.s32 1, %s189
        $region42: #{tpu_custom_call.1} parent=31 // loop_footer_branch
          %188 = sbr.rel target = $region38
        $region43: #{tpu_custom_call.1} parent=31 // loop_exit
          _
        loop: start=0, step=1, limit=16
        $region48: #{tpu_custom_call.1} parent=31 // loop_pre_header
          _
        $region49: #{tpu_custom_call.1} parent=31 // loop_header
          %s211 = sphi 0, %s215
          %p212 = scmp.ge.s32.totalorder %s211, 16
        $region50: #{tpu_custom_call.1} parent=31 // loop_header_branch
          %214 = sbr.rel (%p212) target = $region54
        $region51: #{tpu_custom_call.1} parent=31 // loop_body
          %s216 = sadd.s32 %s187, %s211
          %s217 = sld [smem:[#allocation5 + %s216]]
          %s218 = smul.u32 1, 1
          %s219 = sshll.u32 %s218, 4
          %220 = dma.done [#allocation3], %s219
        $region52: #{tpu_custom_call.1} parent=31 // loop_footer
          %s215 = sadd.s32 1, %s211
        $region53: #{tpu_custom_call.1} parent=31 // loop_footer_branch
          %210 = sbr.rel target = $region49
        $region54: #{tpu_custom_call.1} parent=31 // loop_exit
          _
        %v221 = vld [vmem:[#allocation2] sm:$0xff]
        %v222 = vld [vmem:[#allocation2 + $0x8] sm:$0xff]
        %s223 = scalar_lea.vmem [#allocation6], %s186
        %v224 = vld [vmem:[%s223] sm:$0xff]
        %v225 = vld [vmem:[%s223 + $0x8] sm:$0xff]
        %v226 = vadd.f32 %v221, %v224
        %v227 = vadd.f32 %v222, %v225
        %228 = vadd.xlane.f32.xlu0 %v226
        %v229 = vpop.xlane.xlu0 %228
        %230 = vadd.xlane.f32.xlu0 %v227
        %v231 = vpop.xlane.xlu0 %230
        %v232 = vmul.f32 %v226, %v226
        %v233 = vmul.f32 %v227, %v227
        %234 = vadd.xlane.f32.xlu0 %v232
        %v235 = vpop.xlane.xlu0 %234
        %236 = vadd.xlane.f32.xlu0 %v233
        %v237 = vpop.xlane.xlu0 %236
        %v238 = vmul.f32 %v229, 0.0078125
        %v239 = vmul.f32 %v231, 0.0078125
        %v240 = vmul.f32 %v235, 0.0078125
        %v241 = vmul.f32 %v237, 0.0078125
        %v242 = vmul.f32 %v238, %v238
        %v243 = vmul.f32 %v239, %v239
        %v244 = vsub.f32 %v240, %v242
        %v245 = vsub.f32 %v241, %v243
        %v246 = vmax.f32 %v244, 0.0
        %v247 = vmax.f32 %v245, 0.0
        %v248 = vsub.f32 %v226, %v238
        %v249 = vsub.f32 %v227, %v239
        %v250 = vadd.f32 %v246, 1e-12
        %v251 = vadd.f32 %v247, 1e-12
        %v252 = vrsqrt.pop %v250
        %v253 = vrsqrt.pop %v251
        %v254 = vmul.f32 %v248, %v252
        %v255 = vmul.f32 %v249, %v253
        %v256 = vld [vmem:[%s2] sm:$0x1]
        %v258 = vlaneseq
        %v259 = vshrl.u32 %v258, 7
        %v260 = vsub.s32 0, %v259
        %v261 = vrot.slane %v256, %v260
        %v263 = vmul.f32 %v254, %v261
        %v264 = vmul.f32 %v255, %v261
        %v265 = vld [vmem:[%s3] sm:$0x1]
        %v267 = vlaneseq
        %v268 = vshrl.u32 %v267, 7
        %v269 = vsub.s32 0, %v268
        %v270 = vrot.slane %v265, %v269
        %v272 = vadd.f32 %v263, %v270
        %v273 = vadd.f32 %v264, %v270
        %274 = vst [vmem:[%s183] sm:$0xff] %v272
        %275 = vst [vmem:[%s183 + $0x8] sm:$0xff] %v273
        %s276 = sand.u32 %s109, 1
        %s277 = scalar_lea.sflag [#allocation8], %s276
        %s278 = sand.u32 %s109, 1
        %s279 = smul.addr %s278, 16
        %s280 = scalar_lea.vmem [#allocation9], %s279
        // Predicated region
        $region55: #{tpu_custom_call.1} parent=31 // pred_check
          %p281 = pneg %p119
        $region56: #{tpu_custom_call.1} parent=31 // pred_check_branch
          %283 = sbr.rel (%p281) target = $region58
        $region57: #{tpu_custom_call.1} parent=31 // pred_region
          %s284 = smul.u32 2, %s29
          %s286 = ssub.s32 256, 256
          %287 = vsyncadd %s277, %s286
          %s288 = smul.addr %s28, 2
          %s289 = sadd.s32 %s284, %s288
          %s290 = smul.addr %s289, 128
          %s291 = scalar_lea.hbm %s5, %s290
          %s292 = sshll.u32 %s280, 4
          %s293 = int_to_ptr.vmem [resolvable:$true] %s292
          %298 = dma.vmem_to_hbm [thread:$0]  %s293, 256, %s291, %s277, 128, 128, 8
        $region58: #{tpu_custom_call.1} parent=31 // pred_fallthru
          _
      $region32: #{tpu_custom_call.1} parent=5 // pred_fallthru
        _
      %p299 = scmp.le.s32.totalorder 2, %s19
      // Predicated region
      $region59: #{tpu_custom_call.1} parent=5 // pred_check
        %p300 = pneg %p299
      $region60: #{tpu_custom_call.1} parent=5 // pred_check_branch
        %302 = sbr.rel (%p300) target = $region62
      $region61: #{tpu_custom_call.1} parent=5 // pred_region
        %s303 = ssub.s32 %s19, 2
        // Predicated region
        $region63: #{tpu_custom_call.1} parent=61 // pred_check
          %p304 = pneg %p125
        $region64: #{tpu_custom_call.1} parent=61 // pred_check_branch
          %306 = sbr.rel (%p304) target = $region66
        $region65: #{tpu_custom_call.1} parent=61 // pred_region
          %s307 = sand.u32 %s110, 1
          %s308 = scalar_lea.sflag [#allocation8], %s307
          %s309 = sand.u32 %s110, 1
          %s310 = smul.addr %s309, 16
          %s311 = scalar_lea.vmem [#allocation9], %s310
          %312 = dma.done %s308, 256
        $region66: #{tpu_custom_call.1} parent=61 // pred_fallthru
          _
      $region62: #{tpu_custom_call.1} parent=5 // pred_fallthru
        _
    $region6: #{tpu_custom_call.1} parent=1 // loop_footer
      %s23 = sadd.s32 1, %s19
    $region7: #{tpu_custom_call.1} parent=1 // loop_footer_branch
      %18 = sbr.rel target = $region3
    $region8: #{tpu_custom_call.1} parent=1 // loop_exit
      _
    %313 = vsyncpa [#allocation7], 1
    %s314 = scalar_lea.sflag [#allocation7], 1
    %315 = vsyncpa %s314, 1
    %316 = vsyncpa [#allocation8], 1
    %s317 = scalar_lea.sflag [#allocation8], 1
    %318 = vsyncpa %s317, 1
  %319 = vsyncmov [#allocation3]
  %s320 = vpop.sfrf %319
  %p321 = scmp.eq.s32.totalorder %s320, 0
  %p322 = pneg %p321
  %324 = shalt.err (%p322)

</llo_original>
